<compile_context>
chip_gen: v6e
topology: v6e:2x2x1
jax: 0.10.0
libtpu: 0.0.40
codegen_flags: <defaults>
</compile_context>

<pallas_src>
import functools

import jax
import jax.numpy as jnp
from jax.experimental import pallas as pl
from jax.experimental.pallas import tpu as pltpu


_LANE = 128                       # vreg lane width (last block dim multiple)
_SUBLANE = 8                      # vreg sublane width (2nd-to-last multiple)
_VMEM_LIMIT = 48 * 1024 * 1024    # scoped-VMEM budget; fits v5e/v6e/v7x


# ----------------------------------------------------------------------------
# Small helpers (wrapper-side padding / tiling)
# ----------------------------------------------------------------------------
def _round_up(x, m):
    return ((x + m - 1) // m) * m


def _as_f32(x):
    x = jnp.asarray(x)
    return x if x.dtype == jnp.float32 else x.astype(jnp.float32)


def _pad2(x, rows, cols):
    r, c = x.shape
    if r == rows and c == cols:
        return x
    return jnp.pad(x, ((0, rows - r), (0, cols - c)))


def _pick_tile(dim, target):
    """Largest multiple of 128 <= target that divides `dim` (dim % 128 == 0)."""
    t = max(_LANE, min(target, dim))
    t -= t % _LANE
    while dim % t:
        t -= _LANE
    return t


# ----------------------------------------------------------------------------
# Fused fit(): one pallas_call for the whole D x D matmul chain
# ----------------------------------------------------------------------------
def _fused_fit_kernel(vecs_ref, rhs_pos_ref, rhs_neg_ref, sq_ref, m_ref, a_ref):
    f32 = jnp.float32
    vecs = vecs_ref[...]
    # sP^{+-1/2} = vecs @ (diag(vals^{+-1/2}) @ vecs^T); inverse(vecs)==vecs^T
    # for orthonormal eigenvectors. All intermediates stay VMEM-resident.
    s_pos = jnp.dot(vecs, rhs_pos_ref[...], preferred_element_type=f32)
    s_neg = jnp.dot(vecs, rhs_neg_ref[...], preferred_element_type=f32)
    m = jnp.dot(s_pos, jnp.dot(sq_ref[...], s_pos, preferred_element_type=f32),
                preferred_element_type=f32)
    m_ref[...] = m
    # A = sP^{-1/2} @ M @ sP^{-1/2}  (algebraically == sQ; kept for parity).
    a_ref[...] = jnp.dot(s_neg, jnp.dot(m, s_neg, preferred_element_type=f32),
                         preferred_element_type=f32)


def fused_fit(vecs, vals_pos, vals_neg, sQ):
    """Whole fit() matmul chain as a single VMEM-resident pallas_call.

    NOTE: single block; assumes roughly 10 * Dp^2 * 4 bytes fit in scoped VMEM
    (Dp <= ~1024). For larger D this chain would need output tiling.
    """
    D = vecs.shape[0]
    Dp = _round_up(D, _LANE)

    # diag(vals^p) @ vecs^T is a tiny elementwise row scale; plain JAX.
    rhs_pos = vals_pos[:, None] * vecs.T
    rhs_neg = vals_neg[:, None] * vecs.T

    # Zero padding is exact: every product keeps the [[X,0],[0,0]] structure.
    args = tuple(_pad2(_as_f32(x), Dp, Dp) for x in (vecs, rhs_pos, rhs_neg, sQ))

    spec = pl.BlockSpec((Dp, Dp), lambda i: (0, 0))
    M, A = pl.pallas_call(
        _fused_fit_kernel,
        out_shape=(jax.ShapeDtypeStruct((Dp, Dp), jnp.float32),
                   jax.ShapeDtypeStruct((Dp, Dp), jnp.float32)),
        grid=(1,),
        in_specs=[spec] * 4,
        out_specs=(spec, spec),
        compiler_params=pltpu.CompilerParams(
            dimension_semantics=("arbitrary",),
            vmem_limit_bytes=_VMEM_LIMIT),
    )(*args)
    return M[:D, :D], A[:D, :D]


# ----------------------------------------------------------------------------
# Forward map: out = mQ + (XP - mP) @ A, tiled over (N, D_out, D_in)
# ----------------------------------------------------------------------------
def _oracle_fwd_kernel(xp_ref, mp_ref, mq_ref, a_ref, o_ref, acc_ref, *,
                       mxu_dtype):
    k = pl.program_id(2)

    @pl.when(k == 0)
    def _():
        acc_ref[...] = jnp.zeros_like(acc_ref)

    # Centering stays f32 on the VPU (v5e has no bf16 VALU); only the MXU
    # operands are cast, accumulation is always f32.
    xc = xp_ref[...] - mp_ref[...]
    acc_ref[...] += jnp.dot(xc.astype(mxu_dtype), a_ref[...],
                            preferred_element_type=jnp.float32)

    @pl.when(k == pl.num_programs(2) - 1)
    def _():
        o_ref[...] = (acc_ref[...] + mq_ref[...]).astype(o_ref.dtype)


def oracle_forward(XP, mP, mQ, A, *, mxu_dtype=jnp.float32,
                   tm_target=256, tn_target=256, tk_target=512):
    N, D = XP.shape
    Dp = _round_up(D, _LANE)
    tm = min(tm_target, _round_up(N, _SUBLANE))
    Np = _round_up(N, tm)
    tn = _pick_tile(Dp, tn_target)
    tk = _pick_tile(Dp, tk_target)
    grid = (Np // tm, Dp // tn, Dp // tk)

    # Pad to lane/sublane-aligned shapes: unmasked full-width stores, full MXU
    # occupancy. Padding is exact (zero rows/cols are sliced off at the end).
    xp_p = _pad2(_as_f32(XP), Np, Dp)
    mp_p = _pad2(_as_f32(mP), 1, Dp)
    mq_p = _pad2(_as_f32(mQ), 1, Dp)
    # A is cast once, outside the grid loop (halves its HBM stream when bf16);
    # XP stays f32 and is cast in-kernel after the centering subtract.
    a_p = _pad2(_as_f32(A), Dp, Dp).astype(mxu_dtype)

    a_item = jnp.dtype(mxu_dtype).itemsize
    cost = pl.CostEstimate(
        flops=2 * Np * Dp * Dp,
        transcendentals=0,
        bytes_accessed=int(Np * Dp * 4 * grid[1]         # XP stream (per j)
                           + Dp * Dp * a_item * grid[0]  # A stream  (per i)
                           + Np * Dp * 4                 # output
                           + 2 * Dp * 4))                # mP, mQ

    out = pl.pallas_call(
        functools.partial(_oracle_fwd_kernel, mxu_dtype=mxu_dtype),
        out_shape=jax.ShapeDtypeStruct((Np, Dp), jnp.float32),
        grid_spec=pltpu.PrefetchScalarGridSpec(
            num_scalar_prefetch=0,
            grid=grid,
            in_specs=[
                # NOTE: on v7x, pipeline_mode=pl.Buffered(3) on the XP spec can
                # deepen the HBM stream pipeline further if DMA is exposed.
                pl.BlockSpec((tm, tk), lambda i, j, k: (i, k)),   # XP
                pl.BlockSpec((1, tk), lambda i, j, k: (0, k)),    # mP
                pl.BlockSpec((1, tn), lambda i, j, k: (0, j)),    # mQ
                pl.BlockSpec((tk, tn), lambda i, j, k: (k, j)),   # A
            ],
            out_specs=pl.BlockSpec((tm, tn), lambda i, j, k: (i, j)),
            scratch_shapes=[pltpu.VMEM((tm, tn), jnp.float32)],
        ),
        compiler_params=pltpu.CompilerParams(
            dimension_semantics=("parallel", "parallel", "arbitrary"),
            vmem_limit_bytes=_VMEM_LIMIT),
        cost_estimate=cost,
    )(xp_p, mp_p, mq_p, a_p)
    return out[:N, :D]


# ----------------------------------------------------------------------------
# Module port
# ----------------------------------------------------------------------------
class OracleMapping:
    """JAX/Pallas port of dictionary_learning.mapping.OracleMapping."""

    def __init__(self, mP, mQ, sP, sQ, reg=1e-6, mxu_dtype=jnp.float32):
        self.reg = reg                 # stored for parity (unused, as in torch)
        self.mP = _as_f32(mP).reshape(1, -1)
        self.mQ = _as_f32(mQ).reshape(1, -1)
        self.sP = _as_f32(sP)
        self.sQ = _as_f32(sQ)
        self.mxu_dtype = mxu_dtype     # jnp.bfloat16 recommended on v6e/v7x
        self.M = None
        self.A = None

    def fit(self):
        # torch.linalg.eig / torch.inverse (general complex eigendecomposition)
        # have no TPU/Pallas lowering. sP is a symmetric PSD covariance, so the
        # symmetric eigh is equivalent and inverse(vecs) == vecs.T.
        # TODO(synk): general non-symmetric eig is unavailable on TPU; eigh used.
        vals, vecs = jnp.linalg.eigh(self.sP)
        self.M, self.A = fused_fit(vecs,
                                   jnp.power(vals, 0.5),
                                   jnp.power(vals, -0.5),
                                   self.sQ)

    def __call__(self, XP, XQ):
        # fit() hoisted out of the per-call hot path: sP/sQ are fixed at
        # construction, so A is computed once and reused across forward calls.
        if self.A is None:
            self.fit()
        return oracle_forward(XP, self.mP, self.mQ, self.A,
                              mxu_dtype=self.mxu_dtype)


# ----------------------------------------------------------------------------
# Demo / self-check
# ----------------------------------------------------------------------------
if __name__ == "__main__":
    N, D = 8, 32
    key = jax.random.PRNGKey(0)
    k_xp, k_xq, k_mp, k_mq, k_bp, k_bq = jax.random.split(key, 6)

    XP = jax.random.normal(k_xp, (N, D), dtype=jnp.float32)
    XQ = jax.random.normal(k_xq, (N, D), dtype=jnp.float32)
    mP = jax.random.normal(k_mp, (1, D), dtype=jnp.float32)
    mQ = jax.random.normal(k_mq, (1, D), dtype=jnp.float32)

    # Symmetric positive-definite covariances (well-conditioned, deterministic).
    BP = jax.random.normal(k_bp, (D, D), dtype=jnp.float32)
    BQ = jax.random.normal(k_bq, (D, D), dtype=jnp.float32)
    sP = BP @ BP.T / D + 0.1 * jnp.eye(D, dtype=jnp.float32)
    sQ = BQ @ BQ.T / D + 0.1 * jnp.eye(D, dtype=jnp.float32)

    # Pure-JAX reference.
    vals, vecs = jnp.linalg.eigh(sP)
    sP_pos = vecs @ (jnp.power(vals, 0.5)[:, None] * vecs.T)
    sP_neg = vecs @ (jnp.power(vals, -0.5)[:, None] * vecs.T)
    M_ref = sP_pos @ (sQ @ sP_pos)
    A_ref = sP_neg @ (M_ref @ sP_neg)
    ref = mQ + (XP - mP) @ A_ref

    # f32 MXU path: tight tolerance.
    model = OracleMapping(mP, mQ, sP, sQ, reg=1e-6)
    out = jax.block_until_ready(model(XP, XQ))
    assert out.shape == (N, D)
    assert jnp.allclose(model.A, A_ref, atol=1e-3, rtol=1e-3), "A mismatch"
    assert jnp.allclose(out, ref, atol=1e-3, rtol=1e-3), "forward mismatch (f32)"

    # bf16 MXU path (v6e/v7x recommendation): relaxed tolerance for bf16 mantissa.
    model_bf16 = OracleMapping(mP, mQ, sP, sQ, reg=1e-6, mxu_dtype=jnp.bfloat16)
    out_bf16 = jax.block_until_ready(model_bf16(XP, XQ))
    assert out_bf16.shape == (N, D)
    assert jnp.allclose(out_bf16, ref, atol=1e-1, rtol=1e-1), "forward mismatch (bf16)"

    print("KERNEL_OK")
</pallas_src>

<mosaic_0001>
module attributes {stable_mosaic.version = 11 : i64} {
  func.func @_fused_fit_kernel(%arg0: i32, %arg1: memref<128x128xf32, #tpu.memory_space<vmem>>, %arg2: memref<128x128xf32, #tpu.memory_space<vmem>>, %arg3: memref<128x128xf32, #tpu.memory_space<vmem>>, %arg4: memref<128x128xf32, #tpu.memory_space<vmem>>, %arg5: memref<128x128xf32, #tpu.memory_space<vmem>>, %arg6: memref<128x128xf32, #tpu.memory_space<vmem>>) attributes {dimension_semantics = [#tpu.dimension_semantics<arbitrary>], iteration_bounds = array<i64: 1>, scalar_prefetch = 0 : i64, scratch_operands = 0 : i64, tpu.core_type = #tpu.core_type<tc>, window_params = [{pipeline_mode = #tpu.pipeline_mode<synchronous>, transform_indices = @transform_0, window_bounds = array<i64: 128, 128>}, {pipeline_mode = #tpu.pipeline_mode<synchronous>, transform_indices = @transform_1, window_bounds = array<i64: 128, 128>}, {pipeline_mode = #tpu.pipeline_mode<synchronous>, transform_indices = @transform_2, window_bounds = array<i64: 128, 128>}, {pipeline_mode = #tpu.pipeline_mode<synchronous>, transform_indices = @transform_3, window_bounds = array<i64: 128, 128>}, {pipeline_mode = #tpu.pipeline_mode<synchronous>, transform_indices = @transform_4, window_bounds = array<i64: 128, 128>}, {pipeline_mode = #tpu.pipeline_mode<synchronous>, transform_indices = @transform_5, window_bounds = array<i64: 128, 128>}]} {
    %c0 = arith.constant 0 : index
    %c0_0 = arith.constant 0 : index
    %0 = vector.load %arg1[%c0, %c0_0] : memref<128x128xf32, #tpu.memory_space<vmem>>, vector<128x128xf32>
    %c0_1 = arith.constant 0 : index
    %c0_2 = arith.constant 0 : index
    %1 = vector.load %arg2[%c0_1, %c0_2] : memref<128x128xf32, #tpu.memory_space<vmem>>, vector<128x128xf32>
    %cst = arith.constant dense<0.000000e+00> : vector<128x128xf32>
    %2 = tpu.matmul %0, %1, %cst {dimension_numbers = #tpu.dot_dimension_numbers<[1], [0], [0], [1], [0, 0, 1, 1], [], []>} : vector<128x128xf32>, vector<128x128xf32>, vector<128x128xf32> -> vector<128x128xf32>
    %c0_3 = arith.constant 0 : index
    %c0_4 = arith.constant 0 : index
    %3 = vector.load %arg3[%c0_3, %c0_4] : memref<128x128xf32, #tpu.memory_space<vmem>>, vector<128x128xf32>
    %cst_5 = arith.constant dense<0.000000e+00> : vector<128x128xf32>
    %4 = tpu.matmul %0, %3, %cst_5 {dimension_numbers = #tpu.dot_dimension_numbers<[1], [0], [0], [1], [0, 0, 1, 1], [], []>} : vector<128x128xf32>, vector<128x128xf32>, vector<128x128xf32> -> vector<128x128xf32>
    %c0_6 = arith.constant 0 : index
    %c0_7 = arith.constant 0 : index
    %5 = vector.load %arg4[%c0_6, %c0_7] : memref<128x128xf32, #tpu.memory_space<vmem>>, vector<128x128xf32>
    %cst_8 = arith.constant dense<0.000000e+00> : vector<128x128xf32>
    %6 = tpu.matmul %5, %2, %cst_8 {dimension_numbers = #tpu.dot_dimension_numbers<[1], [0], [0], [1], [0, 0, 1, 1], [], []>} : vector<128x128xf32>, vector<128x128xf32>, vector<128x128xf32> -> vector<128x128xf32>
    %cst_9 = arith.constant dense<0.000000e+00> : vector<128x128xf32>
    %7 = tpu.matmul %2, %6, %cst_9 {dimension_numbers = #tpu.dot_dimension_numbers<[1], [0], [0], [1], [0, 0, 1, 1], [], []>} : vector<128x128xf32>, vector<128x128xf32>, vector<128x128xf32> -> vector<128x128xf32>
    %c0_10 = arith.constant 0 : index
    %c0_11 = arith.constant 0 : index
    %8 = vector.load %arg5[%c0_10, %c0_11] : memref<128x128xf32, #tpu.memory_space<vmem>>, vector<128x128xf32>
    tpu.vector_store %arg5[%c0_10, %c0_11], %7 {strides = array<i32>} : memref<128x128xf32, #tpu.memory_space<vmem>>, vector<128x128xf32>,
    %cst_12 = arith.constant dense<0.000000e+00> : vector<128x128xf32>
    %9 = tpu.matmul %7, %4, %cst_12 {dimension_numbers = #tpu.dot_dimension_numbers<[1], [0], [0], [1], [0, 0, 1, 1], [], []>} : vector<128x128xf32>, vector<128x128xf32>, vector<128x128xf32> -> vector<128x128xf32>
    %cst_13 = arith.constant dense<0.000000e+00> : vector<128x128xf32>
    %10 = tpu.matmul %4, %9, %cst_13 {dimension_numbers = #tpu.dot_dimension_numbers<[1], [0], [0], [1], [0, 0, 1, 1], [], []>} : vector<128x128xf32>, vector<128x128xf32>, vector<128x128xf32> -> vector<128x128xf32>
    %c0_14 = arith.constant 0 : index
    %c0_15 = arith.constant 0 : index
    %11 = vector.load %arg6[%c0_14, %c0_15] : memref<128x128xf32, #tpu.memory_space<vmem>>, vector<128x128xf32>
    tpu.vector_store %arg6[%c0_14, %c0_15], %10 {strides = array<i32>} : memref<128x128xf32, #tpu.memory_space<vmem>>, vector<128x128xf32>,
    return
  }
  func.func @transform_0(%arg0: i32) -> (i32, i32) {
    %c0_i32 = arith.constant 0 : i32
    %c0_i32_0 = arith.constant 0 : i32
    %c0_i32_1 = arith.constant 0 : i32
    return %c0_i32, %c0_i32_0 : i32, i32
  }
  func.func @transform_1(%arg0: i32) -> (i32, i32) {
    %c0_i32 = arith.constant 0 : i32
    %c0_i32_0 = arith.constant 0 : i32
    %c0_i32_1 = arith.constant 0 : i32
    return %c0_i32, %c0_i32_0 : i32, i32
  }
  func.func @transform_2(%arg0: i32) -> (i32, i32) {
    %c0_i32 = arith.constant 0 : i32
    %c0_i32_0 = arith.constant 0 : i32
    %c0_i32_1 = arith.constant 0 : i32
    return %c0_i32, %c0_i32_0 : i32, i32
  }
  func.func @transform_3(%arg0: i32) -> (i32, i32) {
    %c0_i32 = arith.constant 0 : i32
    %c0_i32_0 = arith.constant 0 : i32
    %c0_i32_1 = arith.constant 0 : i32
    return %c0_i32, %c0_i32_0 : i32, i32
  }
  func.func @transform_4(%arg0: i32) -> (i32, i32) {
    %c0_i32 = arith.constant 0 : i32
    %c0_i32_0 = arith.constant 0 : i32
    %c0_i32_1 = arith.constant 0 : i32
    return %c0_i32, %c0_i32_0 : i32, i32
  }
  func.func @transform_5(%arg0: i32) -> (i32, i32) {
    %c0_i32 = arith.constant 0 : i32
    %c0_i32_0 = arith.constant 0 : i32
    %c0_i32_1 = arith.constant 0 : i32
    return %c0_i32, %c0_i32_0 : i32, i32
  }
}

</mosaic_0001>

<llo_original>
// kernel: tpu_custom_call.1
$region0: #{tpu_custom_call.1}
  #allocation0 [shape = 'u32[]', space=smem, size = 0x4, offset = 0x4, fixed_abs, tag = 'smem constant byte address 0x4 - core index']
  #allocation1 [shape = 'u32[144,128]{1,0:T(1,128)}', space=vmem, size = 0x12000, scoped, tag = 'internal scratch']
  %s0 = inlined_call_operand.hbm [shape: f32[128,128], index: 0, kind: input, shape index: {}]
  %s1 = inlined_call_operand.hbm [shape: f32[128,128], index: 1, kind: input, shape index: {}]
  %s2 = inlined_call_operand.hbm [shape: f32[128,128], index: 2, kind: input, shape index: {}]
  %s3 = inlined_call_operand.hbm [shape: f32[128,128], index: 3, kind: input, shape index: {}]
  %s4 = inlined_call_operand.hbm [shape: f32[128,128], index: 4, kind: output, shape index: {0}]
  %s5 = inlined_call_operand.hbm [shape: f32[128,128], index: 5, kind: output, shape index: {1}]
  %6 = xla_tuple %s4, %s5
  %s7 = sld [smem:[#allocation0]]
  $region50: #{tpu_custom_call.1} parent=0
    _
  %s9 = ssub.s32 1, %s7
  %s10 = scalar_select 0, %s9, %s7
  $region1: #{tpu_custom_call.1} parent=0
    #allocation2 [shape = 'u8[65536]{0}', space=vmem, size = 0x10000, scoped, tag = 'input window, operand 0, single buffered']
    #allocation3 [shape = 's32[1]{0}', space=sflag, size = 0x4, scoped, tag = 'scoped memory for tpu_custom_call.1']
    #allocation4 [shape = 's32[1]{0}', space=sflag, size = 0x4, scoped, tag = 'scoped memory for tpu_custom_call.1']
    #allocation5 [shape = 'u8[65536]{0}', space=vmem, size = 0x10000, scoped, tag = 'input window, operand 1, single buffered']
    #allocation6 [shape = 's32[1]{0}', space=sflag, size = 0x4, scoped, tag = 'scoped memory for tpu_custom_call.1']
    #allocation7 [shape = 'u8[65536]{0}', space=vmem, size = 0x10000, scoped, tag = 'input window, operand 2, single buffered']
    #allocation8 [shape = 'u8[65536]{0}', space=vmem, size = 0x10000, scoped, tag = 'input window, operand 3, single buffered']
    #allocation9 [shape = 's32[1]{0}', space=sflag, size = 0x4, scoped, tag = 'scoped memory for tpu_custom_call.1']
    #allocation10 [shape = 'u8[65536]{0}', space=vmem, size = 0x10000, scoped, tag = 'output window, operand 0, single buffered']
    #allocation11 [shape = 'u8[65536]{0}', space=vmem, size = 0x10000, scoped, tag = 'output window, operand 1, single buffered']
    #allocation12 [shape = 's32[1]{0}', space=sflag, size = 0x4, scoped, tag = 'scoped memory for tpu_custom_call.1']
    %11 = vsyncpa [#allocation3], 0
    %12 = vsyncpa [#allocation6], 0
    %13 = vsyncpa [#allocation9], 0
    %14 = vsyncpa [#allocation4], 0
    %15 = vsyncpa [#allocation12], 0
    // Predicated region
    $region2: #{tpu_custom_call.1} parent=1 // pred_check
      _
    $region3: #{tpu_custom_call.1} parent=1 // pred_check_branch
      %17 = sbr.rel (0) target = $region5
    $region4: #{tpu_custom_call.1} parent=1 // pred_region
      %s19 = ssub.s32 2048, 2048
      %20 = vsyncadd [#allocation3], %s19
      %s21 = sshll.u32 [#allocation2], 4
      %s22 = int_to_ptr.vmem [resolvable:$true] %s21
      %27 = dma.hbm_to_vmem [thread:$0]  %s0, 2048, %s22, [#allocation3], 128, 128, 8
    $region5: #{tpu_custom_call.1} parent=1 // pred_fallthru
      _
    // Predicated region
    $region6: #{tpu_custom_call.1} parent=1 // pred_check
      _
    $region7: #{tpu_custom_call.1} parent=1 // pred_check_branch
      %29 = sbr.rel (0) target = $region9
    $region8: #{tpu_custom_call.1} parent=1 // pred_region
      %s31 = ssub.s32 2048, 2048
      %32 = vsyncadd [#allocation6], %s31
      %s33 = sshll.u32 [#allocation5], 4
      %s34 = int_to_ptr.vmem [resolvable:$true] %s33
      %39 = dma.hbm_to_vmem [thread:$0]  %s1, 2048, %s34, [#allocation6], 128, 128, 8
    $region9: #{tpu_custom_call.1} parent=1 // pred_fallthru
      _
    // Predicated region
    $region10: #{tpu_custom_call.1} parent=1 // pred_check
      _
    $region11: #{tpu_custom_call.1} parent=1 // pred_check_branch
      %41 = sbr.rel (0) target = $region13
    $region12: #{tpu_custom_call.1} parent=1 // pred_region
      %s43 = ssub.s32 2048, 2048
      %44 = vsyncadd [#allocation6], %s43
      %s45 = sshll.u32 [#allocation7], 4
      %s46 = int_to_ptr.vmem [resolvable:$true] %s45
      %51 = dma.hbm_to_vmem [thread:$0]  %s2, 2048, %s46, [#allocation6], 128, 128, 8
    $region13: #{tpu_custom_call.1} parent=1 // pred_fallthru
      _
    // Predicated region
    $region14: #{tpu_custom_call.1} parent=1 // pred_check
      _
    $region15: #{tpu_custom_call.1} parent=1 // pred_check_branch
      %53 = sbr.rel (0) target = $region17
    $region16: #{tpu_custom_call.1} parent=1 // pred_region
      %s55 = ssub.s32 2048, 2048
      %56 = vsyncadd [#allocation9], %s55
      %s57 = sshll.u32 [#allocation8], 4
      %s58 = int_to_ptr.vmem [resolvable:$true] %s57
      %63 = dma.hbm_to_vmem [thread:$0]  %s3, 2048, %s58, [#allocation9], 128, 128, 8
    $region17: #{tpu_custom_call.1} parent=1 // pred_fallthru
      _
    // Predicated region
    $region18: #{tpu_custom_call.1} parent=1 // pred_check
      _
    $region19: #{tpu_custom_call.1} parent=1 // pred_check_branch
      %65 = sbr.rel (0) target = $region21
    $region20: #{tpu_custom_call.1} parent=1 // pred_region
      %66 = dma.done [#allocation3], 2048
    $region21: #{tpu_custom_call.1} parent=1 // pred_fallthru
      _
    // Predicated region
    $region22: #{tpu_custom_call.1} parent=1 // pred_check
      _
    $region23: #{tpu_custom_call.1} parent=1 // pred_check_branch
      %68 = sbr.rel (0) target = $region25
    $region24: #{tpu_custom_call.1} parent=1 // pred_region
      %69 = dma.done [#allocation6], 2048
    $region25: #{tpu_custom_call.1} parent=1 // pred_fallthru
      _
    // Predicated region
    $region26: #{tpu_custom_call.1} parent=1 // pred_check
      _
    $region27: #{tpu_custom_call.1} parent=1 // pred_check_branch
      %71 = sbr.rel (0) target = $region29
    $region28: #{tpu_custom_call.1} parent=1 // pred_region
      %72 = dma.done [#allocation6], 2048
    $region29: #{tpu_custom_call.1} parent=1 // pred_fallthru
      _
    // Predicated region
    $region30: #{tpu_custom_call.1} parent=1 // pred_check
      _
    $region31: #{tpu_custom_call.1} parent=1 // pred_check_branch
      %74 = sbr.rel (0) target = $region33
    $region32: #{tpu_custom_call.1} parent=1 // pred_region
      %75 = dma.done [#allocation9], 2048
    $region33: #{tpu_custom_call.1} parent=1 // pred_fallthru
      _
    %v76 = vld [vmem:[#allocation2] sm:$0xff]
    %v77 = vld [vmem:[#allocation2 + $0x8] sm:$0xff]
    %v78 = vld [vmem:[#allocation2 + $0x10] sm:$0xff]
    %v79 = vld [vmem:[#allocation2 + $0x18] sm:$0xff]
    %v80 = vld [vmem:[#allocation2 + $0x20] sm:$0xff]
    %v81 = vld [vmem:[#allocation2 + $0x28] sm:$0xff]
    %v82 = vld [vmem:[#allocation2 + $0x30] sm:$0xff]
    %v83 = vld [vmem:[#allocation2 + $0x38] sm:$0xff]
    %v84 = vld [vmem:[#allocation2 + $0x40] sm:$0xff]
    %v85 = vld [vmem:[#allocation2 + $0x48] sm:$0xff]
    %v86 = vld [vmem:[#allocation2 + $0x50] sm:$0xff]
    %v87 = vld [vmem:[#allocation2 + $0x58] sm:$0xff]
    %v88 = vld [vmem:[#allocation2 + $0x60] sm:$0xff]
    %v89 = vld [vmem:[#allocation2 + $0x68] sm:$0xff]
    %v90 = vld [vmem:[#allocation2 + $0x70] sm:$0xff]
    %v91 = vld [vmem:[#allocation2 + $0x78] sm:$0xff]
    %v92 = vld [vmem:[#allocation5] sm:$0xff]
    %v93 = vld [vmem:[#allocation5 + $0x8] sm:$0xff]
    %v94 = vld [vmem:[#allocation5 + $0x10] sm:$0xff]
    %v95 = vld [vmem:[#allocation5 + $0x18] sm:$0xff]
    %v96 = vld [vmem:[#allocation5 + $0x20] sm:$0xff]
    %v97 = vld [vmem:[#allocation5 + $0x28] sm:$0xff]
    %v98 = vld [vmem:[#allocation5 + $0x30] sm:$0xff]
    %v99 = vld [vmem:[#allocation5 + $0x38] sm:$0xff]
    %v100 = vld [vmem:[#allocation5 + $0x40] sm:$0xff]
    %v101 = vld [vmem:[#allocation5 + $0x48] sm:$0xff]
    %v102 = vld [vmem:[#allocation5 + $0x50] sm:$0xff]
    %v103 = vld [vmem:[#allocation5 + $0x58] sm:$0xff]
    %v104 = vld [vmem:[#allocation5 + $0x60] sm:$0xff]
    %v105 = vld [vmem:[#allocation5 + $0x68] sm:$0xff]
    %v106 = vld [vmem:[#allocation5 + $0x70] sm:$0xff]
    %v107 = vld [vmem:[#allocation5 + $0x78] sm:$0xff]
    %108 = vmatprep.subr.mxu0 0.0
    %109 = vmatpush1.msra.mxu0 %v107
    %110 = vmatprep.subr.mxu0 0.0
    %111 = vmatpush1.msra.mxu0 %v106
    %112 = vmatprep.subr.mxu0 0.0
    %113 = vmatpush1.msra.mxu0 %v105
    %114 = vmatprep.subr.mxu0 0.0
    %115 = vmatpush1.msra.mxu0 %v104
    %116 = vmatprep.subr.mxu0 0.0
    %117 = vmatpush1.msra.mxu0 %v103
    %118 = vmatprep.subr.mxu0 0.0
    %119 = vmatpush1.msra.mxu0 %v102
    %120 = vmatprep.subr.mxu0 0.0
    %121 = vmatpush1.msra.mxu0 %v101
    %122 = vmatprep.subr.mxu0 0.0
    %123 = vmatpush1.msra.mxu0 %v100
    %124 = vmatprep.subr.mxu0 0.0
    %125 = vmatpush1.msra.mxu0 %v99
    %126 = vmatprep.subr.mxu0 0.0
    %127 = vmatpush1.msra.mxu0 %v98
    %128 = vmatprep.subr.mxu0 0.0
    %129 = vmatpush1.msra.mxu0 %v97
    %130 = vmatprep.subr.mxu0 0.0
    %131 = vmatpush1.msra.mxu0 %v96
    %132 = vmatprep.subr.mxu0 0.0
    %133 = vmatpush1.msra.mxu0 %v95
    %134 = vmatprep.subr.mxu0 0.0
    %135 = vmatpush1.msra.mxu0 %v94
    %136 = vmatprep.subr.mxu0 0.0
    %137 = vmatpush1.msra.mxu0 %v93
    %138 = vmatprep.subr.mxu0 0.0
    %139 = vmatpush1.msra.mxu0 %v92
    %140 = vmatprep.subr.mxu0 0.0
    %141 = vmatpush2.msra.mxu0 0.0
    %142 = vmatprep.subr.mxu0 0.0
    %143 = vmatpush2.msra.mxu0 0.0
    %144 = vmatprep.subr.mxu0 0.0
    %145 = vmatpush2.msra.mxu0 0.0
    %146 = vmatprep.subr.mxu0 0.0
    %147 = vmatpush2.msra.mxu0 0.0
    %148 = vmatprep.subr.mxu0 0.0
    %149 = vmatpush2.msra.mxu0 0.0
    %150 = vmatprep.subr.mxu0 0.0
    %151 = vmatpush2.msra.mxu0 0.0
    %152 = vmatprep.subr.mxu0 0.0
    %153 = vmatpush2.msra.mxu0 0.0
    %154 = vmatprep.subr.mxu0 0.0
    %155 = vmatpush2.msra.mxu0 0.0
    %156 = vmatprep.subr.mxu0 0.0
    %157 = vmatpush2.msra.mxu0 0.0
    %158 = vmatprep.subr.mxu0 0.0
    %159 = vmatpush2.msra.mxu0 0.0
    %160 = vmatprep.subr.mxu0 0.0
    %161 = vmatpush2.msra.mxu0 0.0
    %162 = vmatprep.subr.mxu0 0.0
    %163 = vmatpush2.msra.mxu0 0.0
    %164 = vmatprep.subr.mxu0 0.0
    %165 = vmatpush2.msra.mxu0 0.0
    %166 = vmatprep.subr.mxu0 0.0
    %167 = vmatpush2.msra.mxu0 0.0
    %168 = vmatprep.subr.mxu0 0.0
    %169 = vmatpush2.msra.mxu0 0.0
    %170 = vmatprep.subr.mxu0 0.0
    %171 = vmatpush2.msra.mxu0 0.0
    %172 = vmatprep.mubr.f32.mxu0 0.0
    %173 = vmatmul.mubr.f32.gmra.mxu0 %v76
    %v174 = vpop.f32.mrf.mxu0
    %v175 = vadd.f32 0.0, %v174
    %v176 = vpop.f32.mrf.mxu0
    %177 = vmatprep.mubr.f32.mxu0 0.0
    %178 = vmatmul.mubr.f32.gmra.mxu0 %v77
    %v179 = vpop.f32.mrf.mxu0
    %v180 = vadd.f32 0.0, %v179
    %v181 = vpop.f32.mrf.mxu0
    %182 = vmatprep.mubr.f32.mxu0 0.0
    %183 = vmatmul.mubr.f32.gmra.mxu0 %v78
    %v184 = vpop.f32.mrf.mxu0
    %v185 = vadd.f32 0.0, %v184
    %v186 = vpop.f32.mrf.mxu0
    %187 = vmatprep.mubr.f32.mxu0 0.0
    %188 = vmatmul.mubr.f32.gmra.mxu0 %v79
    %v189 = vpop.f32.mrf.mxu0
    %v190 = vadd.f32 0.0, %v189
    %v191 = vpop.f32.mrf.mxu0
    %192 = vmatprep.mubr.f32.mxu0 0.0
    %193 = vmatmul.mubr.f32.gmra.mxu0 %v80
    %v194 = vpop.f32.mrf.mxu0
    %v195 = vadd.f32 0.0, %v194
    %v196 = vpop.f32.mrf.mxu0
    %197 = vmatprep.mubr.f32.mxu0 0.0
    %198 = vmatmul.mubr.f32.gmra.mxu0 %v81
    %v199 = vpop.f32.mrf.mxu0
    %v200 = vadd.f32 0.0, %v199
    %v201 = vpop.f32.mrf.mxu0
    %202 = vmatprep.mubr.f32.mxu0 0.0
    %203 = vmatmul.mubr.f32.gmra.mxu0 %v82
    %v204 = vpop.f32.mrf.mxu0
    %v205 = vadd.f32 0.0, %v204
    %v206 = vpop.f32.mrf.mxu0
    %207 = vmatprep.mubr.f32.mxu0 0.0
    %208 = vmatmul.mubr.f32.gmra.mxu0 %v83
    %v209 = vpop.f32.mrf.mxu0
    %v210 = vadd.f32 0.0, %v209
    %v211 = vpop.f32.mrf.mxu0
    %212 = vmatprep.mubr.f32.mxu0 0.0
    %213 = vmatmul.mubr.f32.gmra.mxu0 %v84
    %v214 = vpop.f32.mrf.mxu0
    %v215 = vadd.f32 0.0, %v214
    %v216 = vpop.f32.mrf.mxu0
    %217 = vmatprep.mubr.f32.mxu0 0.0
    %218 = vmatmul.mubr.f32.gmra.mxu0 %v85
    %v219 = vpop.f32.mrf.mxu0
    %v220 = vadd.f32 0.0, %v219
    %v221 = vpop.f32.mrf.mxu0
    %222 = vmatprep.mubr.f32.mxu0 0.0
    %223 = vmatmul.mubr.f32.gmra.mxu0 %v86
    %v224 = vpop.f32.mrf.mxu0
    %v225 = vadd.f32 0.0, %v224
    %v226 = vpop.f32.mrf.mxu0
    %227 = vmatprep.mubr.f32.mxu0 0.0
    %228 = vmatmul.mubr.f32.gmra.mxu0 %v87
    %v229 = vpop.f32.mrf.mxu0
    %v230 = vadd.f32 0.0, %v229
    %v231 = vpop.f32.mrf.mxu0
    %232 = vmatprep.mubr.f32.mxu0 0.0
    %233 = vmatmul.mubr.f32.gmra.mxu0 %v88
    %v234 = vpop.f32.mrf.mxu0
    %v235 = vadd.f32 0.0, %v234
    %v236 = vpop.f32.mrf.mxu0
    %237 = vmatprep.mubr.f32.mxu0 0.0
    %238 = vmatmul.mubr.f32.gmra.mxu0 %v89
    %v239 = vpop.f32.mrf.mxu0
    %v240 = vadd.f32 0.0, %v239
    %v241 = vpop.f32.mrf.mxu0
    %242 = vmatprep.mubr.f32.mxu0 0.0
    %243 = vmatmul.mubr.f32.gmra.mxu0 %v90
    %v244 = vpop.f32.mrf.mxu0
    %v245 = vadd.f32 0.0, %v244
    %v246 = vpop.f32.mrf.mxu0
    %247 = vmatprep.mubr.f32.mxu0 0.0
    %248 = vmatmul.mubr.f32.gmra.mxu0 %v91
    %v249 = vpop.f32.mrf.mxu0
    %v250 = vadd.f32 0.0, %v249
    %v251 = vpop.f32.mrf.mxu0
    %252 = vdwg.mxu0
    %v253 = vld [vmem:[#allocation7] sm:$0xff]
    %v254 = vld [vmem:[#allocation7 + $0x8] sm:$0xff]
    %v255 = vld [vmem:[#allocation7 + $0x10] sm:$0xff]
    %v256 = vld [vmem:[#allocation7 + $0x18] sm:$0xff]
    %v257 = vld [vmem:[#allocation7 + $0x20] sm:$0xff]
    %v258 = vld [vmem:[#allocation7 + $0x28] sm:$0xff]
    %v259 = vld [vmem:[#allocation7 + $0x30] sm:$0xff]
    %v260 = vld [vmem:[#allocation7 + $0x38] sm:$0xff]
    %v261 = vld [vmem:[#allocation7 + $0x40] sm:$0xff]
    %v262 = vld [vmem:[#allocation7 + $0x48] sm:$0xff]
    %v263 = vld [vmem:[#allocation7 + $0x50] sm:$0xff]
    %v264 = vld [vmem:[#allocation7 + $0x58] sm:$0xff]
    %v265 = vld [vmem:[#allocation7 + $0x60] sm:$0xff]
    %v266 = vld [vmem:[#allocation7 + $0x68] sm:$0xff]
    %v267 = vld [vmem:[#allocation7 + $0x70] sm:$0xff]
    %v268 = vld [vmem:[#allocation7 + $0x78] sm:$0xff]
    %269 = vmatprep.subr.mxu0 0.0
    %270 = vmatpush1.msra.mxu0 %v268
    %271 = vmatprep.subr.mxu0 0.0
    %272 = vmatpush1.msra.mxu0 %v267
    %273 = vmatprep.subr.mxu0 0.0
    %274 = vmatpush1.msra.mxu0 %v266
    %275 = vmatprep.subr.mxu0 0.0
    %276 = vmatpush1.msra.mxu0 %v265
    %277 = vmatprep.subr.mxu0 0.0
    %278 = vmatpush1.msra.mxu0 %v264
    %279 = vmatprep.subr.mxu0 0.0
    %280 = vmatpush1.msra.mxu0 %v263
    %281 = vmatprep.subr.mxu0 0.0
    %282 = vmatpush1.msra.mxu0 %v262
    %283 = vmatprep.subr.mxu0 0.0
    %284 = vmatpush1.msra.mxu0 %v261
    %285 = vmatprep.subr.mxu0 0.0
    %286 = vmatpush1.msra.mxu0 %v260
    %287 = vmatprep.subr.mxu0 0.0
    %288 = vmatpush1.msra.mxu0 %v259
    %289 = vmatprep.subr.mxu0 0.0
    %290 = vmatpush1.msra.mxu0 %v258
    %291 = vmatprep.subr.mxu0 0.0
    %292 = vmatpush1.msra.mxu0 %v257
    %293 = vmatprep.subr.mxu0 0.0
    %294 = vmatpush1.msra.mxu0 %v256
    %295 = vmatprep.subr.mxu0 0.0
    %296 = vmatpush1.msra.mxu0 %v255
    %297 = vmatprep.subr.mxu0 0.0
    %298 = vmatpush1.msra.mxu0 %v254
    %299 = vmatprep.subr.mxu0 0.0
    %300 = vmatpush1.msra.mxu0 %v253
    %301 = vmatprep.subr.mxu0 0.0
    %302 = vmatpush2.msra.mxu0 0.0
    %303 = vmatprep.subr.mxu0 0.0
    %304 = vmatpush2.msra.mxu0 0.0
    %305 = vmatprep.subr.mxu0 0.0
    %306 = vmatpush2.msra.mxu0 0.0
    %307 = vmatprep.subr.mxu0 0.0
    %308 = vmatpush2.msra.mxu0 0.0
    %309 = vmatprep.subr.mxu0 0.0
    %310 = vmatpush2.msra.mxu0 0.0
    %311 = vmatprep.subr.mxu0 0.0
    %312 = vmatpush2.msra.mxu0 0.0
    %313 = vmatprep.subr.mxu0 0.0
    %314 = vmatpush2.msra.mxu0 0.0
    %315 = vmatprep.subr.mxu0 0.0
    %316 = vmatpush2.msra.mxu0 0.0
    %317 = vmatprep.subr.mxu0 0.0
    %318 = vmatpush2.msra.mxu0 0.0
    %319 = vmatprep.subr.mxu0 0.0
    %320 = vmatpush2.msra.mxu0 0.0
    %321 = vmatprep.subr.mxu0 0.0
    %322 = vmatpush2.msra.mxu0 0.0
    %323 = vmatprep.subr.mxu0 0.0
    %324 = vmatpush2.msra.mxu0 0.0
    %325 = vmatprep.subr.mxu0 0.0
    %326 = vmatpush2.msra.mxu0 0.0
    %327 = vmatprep.subr.mxu0 0.0
    %328 = vmatpush2.msra.mxu0 0.0
    %329 = vmatprep.subr.mxu0 0.0
    %330 = vmatpush2.msra.mxu0 0.0
    %331 = vmatprep.subr.mxu0 0.0
    %332 = vmatpush2.msra.mxu0 0.0
    %333 = vmatprep.mubr.f32.mxu0 0.0
    %334 = vmatmul.mubr.f32.gmra.mxu0 %v76
    %v335 = vpop.f32.mrf.mxu0
    %v336 = vadd.f32 0.0, %v335
    %v337 = vpop.f32.mrf.mxu0
    %338 = vmatprep.mubr.f32.mxu0 0.0
    %339 = vmatmul.mubr.f32.gmra.mxu0 %v77
    %v340 = vpop.f32.mrf.mxu0
    %v341 = vadd.f32 0.0, %v340
    %v342 = vpop.f32.mrf.mxu0
    %343 = vmatprep.mubr.f32.mxu0 0.0
    %344 = vmatmul.mubr.f32.gmra.mxu0 %v78
    %v345 = vpop.f32.mrf.mxu0
    %v346 = vadd.f32 0.0, %v345
    %v347 = vpop.f32.mrf.mxu0
    %348 = vmatprep.mubr.f32.mxu0 0.0
    %349 = vmatmul.mubr.f32.gmra.mxu0 %v79
    %v350 = vpop.f32.mrf.mxu0
    %v351 = vadd.f32 0.0, %v350
    %v352 = vpop.f32.mrf.mxu0
    %353 = vmatprep.mubr.f32.mxu0 0.0
    %354 = vmatmul.mubr.f32.gmra.mxu0 %v80
    %v355 = vpop.f32.mrf.mxu0
    %v356 = vadd.f32 0.0, %v355
    %v357 = vpop.f32.mrf.mxu0
    %358 = vmatprep.mubr.f32.mxu0 0.0
    %359 = vmatmul.mubr.f32.gmra.mxu0 %v81
    %v360 = vpop.f32.mrf.mxu0
    %v361 = vadd.f32 0.0, %v360
    %v362 = vpop.f32.mrf.mxu0
    %363 = vmatprep.mubr.f32.mxu0 0.0
    %364 = vmatmul.mubr.f32.gmra.mxu0 %v82
    %v365 = vpop.f32.mrf.mxu0
    %v366 = vadd.f32 0.0, %v365
    %v367 = vpop.f32.mrf.mxu0
    %368 = vmatprep.mubr.f32.mxu0 0.0
    %369 = vmatmul.mubr.f32.gmra.mxu0 %v83
    %v370 = vpop.f32.mrf.mxu0
    %v371 = vadd.f32 0.0, %v370
    %v372 = vpop.f32.mrf.mxu0
    %373 = vmatprep.mubr.f32.mxu0 0.0
    %374 = vmatmul.mubr.f32.gmra.mxu0 %v84
    %v375 = vpop.f32.mrf.mxu0
    %v376 = vadd.f32 0.0, %v375
    %v377 = vpop.f32.mrf.mxu0
    %378 = vmatprep.mubr.f32.mxu0 0.0
    %379 = vmatmul.mubr.f32.gmra.mxu0 %v85
    %v380 = vpop.f32.mrf.mxu0
    %v381 = vadd.f32 0.0, %v380
    %v382 = vpop.f32.mrf.mxu0
    %383 = vmatprep.mubr.f32.mxu0 0.0
    %384 = vmatmul.mubr.f32.gmra.mxu0 %v86
    %v385 = vpop.f32.mrf.mxu0
    %v386 = vadd.f32 0.0, %v385
    %v387 = vpop.f32.mrf.mxu0
    %388 = vmatprep.mubr.f32.mxu0 0.0
    %389 = vmatmul.mubr.f32.gmra.mxu0 %v87
    %v390 = vpop.f32.mrf.mxu0
    %v391 = vadd.f32 0.0, %v390
    %v392 = vpop.f32.mrf.mxu0
    %393 = vmatprep.mubr.f32.mxu0 0.0
    %394 = vmatmul.mubr.f32.gmra.mxu0 %v88
    %v395 = vpop.f32.mrf.mxu0
    %v396 = vadd.f32 0.0, %v395
    %v397 = vpop.f32.mrf.mxu0
    %398 = vmatprep.mubr.f32.mxu0 0.0
    %399 = vmatmul.mubr.f32.gmra.mxu0 %v89
    %v400 = vpop.f32.mrf.mxu0
    %v401 = vadd.f32 0.0, %v400
    %v402 = vpop.f32.mrf.mxu0
    %403 = vmatprep.mubr.f32.mxu0 0.0
    %404 = vmatmul.mubr.f32.gmra.mxu0 %v90
    %v405 = vpop.f32.mrf.mxu0
    %v406 = vadd.f32 0.0, %v405
    %v407 = vpop.f32.mrf.mxu0
    %408 = vmatprep.mubr.f32.mxu0 0.0
    %409 = vmatmul.mubr.f32.gmra.mxu0 %v91
    %v410 = vpop.f32.mrf.mxu0
    %v411 = vadd.f32 0.0, %v410
    %v412 = vpop.f32.mrf.mxu0
    %413 = vdwg.mxu0
    %v414 = vld [vmem:[#allocation8] sm:$0xff]
    %v415 = vld [vmem:[#allocation8 + $0x8] sm:$0xff]
    %v416 = vld [vmem:[#allocation8 + $0x10] sm:$0xff]
    %v417 = vld [vmem:[#allocation8 + $0x18] sm:$0xff]
    %v418 = vld [vmem:[#allocation8 + $0x20] sm:$0xff]
    %v419 = vld [vmem:[#allocation8 + $0x28] sm:$0xff]
    %v420 = vld [vmem:[#allocation8 + $0x30] sm:$0xff]
    %v421 = vld [vmem:[#allocation8 + $0x38] sm:$0xff]
    %v422 = vld [vmem:[#allocation8 + $0x40] sm:$0xff]
    %v423 = vld [vmem:[#allocation8 + $0x48] sm:$0xff]
    %v424 = vld [vmem:[#allocation8 + $0x50] sm:$0xff]
    %v425 = vld [vmem:[#allocation8 + $0x58] sm:$0xff]
    %v426 = vld [vmem:[#allocation8 + $0x60] sm:$0xff]
    %v427 = vld [vmem:[#allocation8 + $0x68] sm:$0xff]
    %v428 = vld [vmem:[#allocation8 + $0x70] sm:$0xff]
    %v429 = vld [vmem:[#allocation8 + $0x78] sm:$0xff]
    %430 = vmatprep.subr.mxu0 0.0
    %431 = vmatpush1.msra.mxu0 %v250
    %432 = vmatprep.subr.mxu0 0.0
    %433 = vmatpush1.msra.mxu0 %v245
    %434 = vmatprep.subr.mxu0 0.0
    %435 = vmatpush1.msra.mxu0 %v240
    %436 = vmatprep.subr.mxu0 0.0
    %437 = vmatpush1.msra.mxu0 %v235
    %438 = vmatprep.subr.mxu0 0.0
    %439 = vmatpush1.msra.mxu0 %v230
    %440 = vmatprep.subr.mxu0 0.0
    %441 = vmatpush1.msra.mxu0 %v225
    %442 = vmatprep.subr.mxu0 0.0
    %443 = vmatpush1.msra.mxu0 %v220
    %444 = vmatprep.subr.mxu0 0.0
    %445 = vmatpush1.msra.mxu0 %v215
    %446 = vmatprep.subr.mxu0 0.0
    %447 = vmatpush1.msra.mxu0 %v210
    %448 = vmatprep.subr.mxu0 0.0
    %449 = vmatpush1.msra.mxu0 %v205
    %450 = vmatprep.subr.mxu0 0.0
    %451 = vmatpush1.msra.mxu0 %v200
    %452 = vmatprep.subr.mxu0 0.0
    %453 = vmatpush1.msra.mxu0 %v195
    %454 = vmatprep.subr.mxu0 0.0
    %455 = vmatpush1.msra.mxu0 %v190
    %456 = vmatprep.subr.mxu0 0.0
    %457 = vmatpush1.msra.mxu0 %v185
    %458 = vmatprep.subr.mxu0 0.0
    %459 = vmatpush1.msra.mxu0 %v180
    %460 = vmatprep.subr.mxu0 0.0
    %461 = vmatpush1.msra.mxu0 %v175
    %462 = vmatprep.subr.mxu0 0.0
    %463 = vmatpush2.msra.mxu0 0.0
    %464 = vmatprep.subr.mxu0 0.0
    %465 = vmatpush2.msra.mxu0 0.0
    %466 = vmatprep.subr.mxu0 0.0
    %467 = vmatpush2.msra.mxu0 0.0
    %468 = vmatprep.subr.mxu0 0.0
    %469 = vmatpush2.msra.mxu0 0.0
    %470 = vmatprep.subr.mxu0 0.0
    %471 = vmatpush2.msra.mxu0 0.0
    %472 = vmatprep.subr.mxu0 0.0
    %473 = vmatpush2.msra.mxu0 0.0
    %474 = vmatprep.subr.mxu0 0.0
    %475 = vmatpush2.msra.mxu0 0.0
    %476 = vmatprep.subr.mxu0 0.0
    %477 = vmatpush2.msra.mxu0 0.0
    %478 = vmatprep.subr.mxu0 0.0
    %479 = vmatpush2.msra.mxu0 0.0
    %480 = vmatprep.subr.mxu0 0.0
    %481 = vmatpush2.msra.mxu0 0.0
    %482 = vmatprep.subr.mxu0 0.0
    %483 = vmatpush2.msra.mxu0 0.0
    %484 = vmatprep.subr.mxu0 0.0
    %485 = vmatpush2.msra.mxu0 0.0
    %486 = vmatprep.subr.mxu0 0.0
    %487 = vmatpush2.msra.mxu0 0.0
    %488 = vmatprep.subr.mxu0 0.0
    %489 = vmatpush2.msra.mxu0 0.0
    %490 = vmatprep.subr.mxu0 0.0
    %491 = vmatpush2.msra.mxu0 0.0
    %492 = vmatprep.subr.mxu0 0.0
    %493 = vmatpush2.msra.mxu0 0.0
    %494 = vmatprep.mubr.f32.mxu0 0.0
    %495 = vmatmul.mubr.f32.gmra.mxu0 %v414
    %v496 = vpop.f32.mrf.mxu0
    %v497 = vadd.f32 0.0, %v496
    %v498 = vpop.f32.mrf.mxu0
    %499 = vmatprep.mubr.f32.mxu0 0.0
    %500 = vmatmul.mubr.f32.gmra.mxu0 %v415
    %v501 = vpop.f32.mrf.mxu0
    %v502 = vadd.f32 0.0, %v501
    %v503 = vpop.f32.mrf.mxu0
    %504 = vmatprep.mubr.f32.mxu0 0.0
    %505 = vmatmul.mubr.f32.gmra.mxu0 %v416
    %v506 = vpop.f32.mrf.mxu0
    %v507 = vadd.f32 0.0, %v506
    %v508 = vpop.f32.mrf.mxu0
    %509 = vmatprep.mubr.f32.mxu0 0.0
    %510 = vmatmul.mubr.f32.gmra.mxu0 %v417
    %v511 = vpop.f32.mrf.mxu0
    %v512 = vadd.f32 0.0, %v511
    %v513 = vpop.f32.mrf.mxu0
    %514 = vmatprep.mubr.f32.mxu0 0.0
    %515 = vmatmul.mubr.f32.gmra.mxu0 %v418
    %v516 = vpop.f32.mrf.mxu0
    %v517 = vadd.f32 0.0, %v516
    %v518 = vpop.f32.mrf.mxu0
    %519 = vmatprep.mubr.f32.mxu0 0.0
    %520 = vmatmul.mubr.f32.gmra.mxu0 %v419
    %v521 = vpop.f32.mrf.mxu0
    %v522 = vadd.f32 0.0, %v521
    %v523 = vpop.f32.mrf.mxu0
    %524 = vmatprep.mubr.f32.mxu0 0.0
    %525 = vmatmul.mubr.f32.gmra.mxu0 %v420
    %v526 = vpop.f32.mrf.mxu0
    %v527 = vadd.f32 0.0, %v526
    %v528 = vpop.f32.mrf.mxu0
    %529 = vmatprep.mubr.f32.mxu0 0.0
    %530 = vmatmul.mubr.f32.gmra.mxu0 %v421
    %v531 = vpop.f32.mrf.mxu0
    %v532 = vadd.f32 0.0, %v531
    %v533 = vpop.f32.mrf.mxu0
    %534 = vmatprep.mubr.f32.mxu0 0.0
    %535 = vmatmul.mubr.f32.gmra.mxu0 %v422
    %v536 = vpop.f32.mrf.mxu0
    %v537 = vadd.f32 0.0, %v536
    %v538 = vpop.f32.mrf.mxu0
    %539 = vmatprep.mubr.f32.mxu0 0.0
    %540 = vmatmul.mubr.f32.gmra.mxu0 %v423
    %v541 = vpop.f32.mrf.mxu0
    %v542 = vadd.f32 0.0, %v541
    %v543 = vpop.f32.mrf.mxu0
    %544 = vmatprep.mubr.f32.mxu0 0.0
    %545 = vmatmul.mubr.f32.gmra.mxu0 %v424
    %v546 = vpop.f32.mrf.mxu0
    %v547 = vadd.f32 0.0, %v546
    %v548 = vpop.f32.mrf.mxu0
    %549 = vmatprep.mubr.f32.mxu0 0.0
    %550 = vmatmul.mubr.f32.gmra.mxu0 %v425
    %v551 = vpop.f32.mrf.mxu0
    %v552 = vadd.f32 0.0, %v551
    %v553 = vpop.f32.mrf.mxu0
    %554 = vmatprep.mubr.f32.mxu0 0.0
    %555 = vmatmul.mubr.f32.gmra.mxu0 %v426
    %v556 = vpop.f32.mrf.mxu0
    %v557 = vadd.f32 0.0, %v556
    %v558 = vpop.f32.mrf.mxu0
    %559 = vmatprep.mubr.f32.mxu0 0.0
    %560 = vmatmul.mubr.f32.gmra.mxu0 %v427
    %v561 = vpop.f32.mrf.mxu0
    %v562 = vadd.f32 0.0, %v561
    %v563 = vpop.f32.mrf.mxu0
    %564 = vmatprep.mubr.f32.mxu0 0.0
    %565 = vmatmul.mubr.f32.gmra.mxu0 %v428
    %v566 = vpop.f32.mrf.mxu0
    %v567 = vadd.f32 0.0, %v566
    %v568 = vpop.f32.mrf.mxu0
    %569 = vmatprep.mubr.f32.mxu0 0.0
    %570 = vmatmul.mubr.f32.gmra.mxu0 %v429
    %v571 = vpop.f32.mrf.mxu0
    %v572 = vadd.f32 0.0, %v571
    %v573 = vpop.f32.mrf.mxu0
    %574 = vdwg.mxu0
    %575 = vmatprep.subr.mxu0 0.0
    %576 = vmatpush1.msra.mxu0 %v572
    %577 = vmatprep.subr.mxu0 0.0
    %578 = vmatpush1.msra.mxu0 %v567
    %579 = vmatprep.subr.mxu0 0.0
    %580 = vmatpush1.msra.mxu0 %v562
    %581 = vmatprep.subr.mxu0 0.0
    %582 = vmatpush1.msra.mxu0 %v557
    %583 = vmatprep.subr.mxu0 0.0
    %584 = vmatpush1.msra.mxu0 %v552
    %585 = vmatprep.subr.mxu0 0.0
    %586 = vmatpush1.msra.mxu0 %v547
    %587 = vmatprep.subr.mxu0 0.0
    %588 = vmatpush1.msra.mxu0 %v542
    %589 = vmatprep.subr.mxu0 0.0
    %590 = vmatpush1.msra.mxu0 %v537
    %591 = vmatprep.subr.mxu0 0.0
    %592 = vmatpush1.msra.mxu0 %v532
    %593 = vmatprep.subr.mxu0 0.0
    %594 = vmatpush1.msra.mxu0 %v527
    %595 = vmatprep.subr.mxu0 0.0
    %596 = vmatpush1.msra.mxu0 %v522
    %597 = vmatprep.subr.mxu0 0.0
    %598 = vmatpush1.msra.mxu0 %v517
    %599 = vmatprep.subr.mxu0 0.0
    %600 = vmatpush1.msra.mxu0 %v512
    %601 = vmatprep.subr.mxu0 0.0
    %602 = vmatpush1.msra.mxu0 %v507
    %603 = vmatprep.subr.mxu0 0.0
    %604 = vmatpush1.msra.mxu0 %v502
    %605 = vmatprep.subr.mxu0 0.0
    %606 = vmatpush1.msra.mxu0 %v497
    %607 = vmatprep.subr.mxu0 0.0
    %608 = vmatpush2.msra.mxu0 0.0
    %609 = vmatprep.subr.mxu0 0.0
    %610 = vmatpush2.msra.mxu0 0.0
    %611 = vmatprep.subr.mxu0 0.0
    %612 = vmatpush2.msra.mxu0 0.0
    %613 = vmatprep.subr.mxu0 0.0
    %614 = vmatpush2.msra.mxu0 0.0
    %615 = vmatprep.subr.mxu0 0.0
    %616 = vmatpush2.msra.mxu0 0.0
    %617 = vmatprep.subr.mxu0 0.0
    %618 = vmatpush2.msra.mxu0 0.0
    %619 = vmatprep.subr.mxu0 0.0
    %620 = vmatpush2.msra.mxu0 0.0
    %621 = vmatprep.subr.mxu0 0.0
    %622 = vmatpush2.msra.mxu0 0.0
    %623 = vmatprep.subr.mxu0 0.0
    %624 = vmatpush2.msra.mxu0 0.0
    %625 = vmatprep.subr.mxu0 0.0
    %626 = vmatpush2.msra.mxu0 0.0
    %627 = vmatprep.subr.mxu0 0.0
    %628 = vmatpush2.msra.mxu0 0.0
    %629 = vmatprep.subr.mxu0 0.0
    %630 = vmatpush2.msra.mxu0 0.0
    %631 = vmatprep.subr.mxu0 0.0
    %632 = vmatpush2.msra.mxu0 0.0
    %633 = vmatprep.subr.mxu0 0.0
    %634 = vmatpush2.msra.mxu0 0.0
    %635 = vmatprep.subr.mxu0 0.0
    %636 = vmatpush2.msra.mxu0 0.0
    %637 = vmatprep.subr.mxu0 0.0
    %638 = vmatpush2.msra.mxu0 0.0
    %639 = vmatprep.mubr.f32.mxu0 0.0
    %640 = vmatmul.mubr.f32.gmra.mxu0 %v175
    %v641 = vpop.f32.mrf.mxu0
    %v642 = vadd.f32 0.0, %v641
    %v643 = vpop.f32.mrf.mxu0
    %644 = vmatprep.mubr.f32.mxu0 0.0
    %645 = vmatmul.mubr.f32.gmra.mxu0 %v180
    %v646 = vpop.f32.mrf.mxu0
    %v647 = vadd.f32 0.0, %v646
    %v648 = vpop.f32.mrf.mxu0
    %649 = vmatprep.mubr.f32.mxu0 0.0
    %650 = vmatmul.mubr.f32.gmra.mxu0 %v185
    %v651 = vpop.f32.mrf.mxu0
    %v652 = vadd.f32 0.0, %v651
    %v653 = vpop.f32.mrf.mxu0
    %654 = vmatprep.mubr.f32.mxu0 0.0
    %655 = vmatmul.mubr.f32.gmra.mxu0 %v190
    %v656 = vpop.f32.mrf.mxu0
    %v657 = vadd.f32 0.0, %v656
    %v658 = vpop.f32.mrf.mxu0
    %659 = vmatprep.mubr.f32.mxu0 0.0
    %660 = vmatmul.mubr.f32.gmra.mxu0 %v195
    %v661 = vpop.f32.mrf.mxu0
    %v662 = vadd.f32 0.0, %v661
    %v663 = vpop.f32.mrf.mxu0
    %664 = vmatprep.mubr.f32.mxu0 0.0
    %665 = vmatmul.mubr.f32.gmra.mxu0 %v200
    %v666 = vpop.f32.mrf.mxu0
    %v667 = vadd.f32 0.0, %v666
    %v668 = vpop.f32.mrf.mxu0
    %669 = vmatprep.mubr.f32.mxu0 0.0
    %670 = vmatmul.mubr.f32.gmra.mxu0 %v205
    %v671 = vpop.f32.mrf.mxu0
    %v672 = vadd.f32 0.0, %v671
    %v673 = vpop.f32.mrf.mxu0
    %674 = vmatprep.mubr.f32.mxu0 0.0
    %675 = vmatmul.mubr.f32.gmra.mxu0 %v210
    %v676 = vpop.f32.mrf.mxu0
    %v677 = vadd.f32 0.0, %v676
    %v678 = vpop.f32.mrf.mxu0
    %679 = vmatprep.mubr.f32.mxu0 0.0
    %680 = vmatmul.mubr.f32.gmra.mxu0 %v215
    %v681 = vpop.f32.mrf.mxu0
    %v682 = vadd.f32 0.0, %v681
    %v683 = vpop.f32.mrf.mxu0
    %684 = vmatprep.mubr.f32.mxu0 0.0
    %685 = vmatmul.mubr.f32.gmra.mxu0 %v220
    %v686 = vpop.f32.mrf.mxu0
    %v687 = vadd.f32 0.0, %v686
    %v688 = vpop.f32.mrf.mxu0
    %689 = vmatprep.mubr.f32.mxu0 0.0
    %690 = vmatmul.mubr.f32.gmra.mxu0 %v225
    %v691 = vpop.f32.mrf.mxu0
    %v692 = vadd.f32 0.0, %v691
    %v693 = vpop.f32.mrf.mxu0
    %694 = vmatprep.mubr.f32.mxu0 0.0
    %695 = vmatmul.mubr.f32.gmra.mxu0 %v230
    %v696 = vpop.f32.mrf.mxu0
    %v697 = vadd.f32 0.0, %v696
    %v698 = vpop.f32.mrf.mxu0
    %699 = vmatprep.mubr.f32.mxu0 0.0
    %700 = vmatmul.mubr.f32.gmra.mxu0 %v235
    %v701 = vpop.f32.mrf.mxu0
    %v702 = vadd.f32 0.0, %v701
    %v703 = vpop.f32.mrf.mxu0
    %704 = vmatprep.mubr.f32.mxu0 0.0
    %705 = vmatmul.mubr.f32.gmra.mxu0 %v240
    %v706 = vpop.f32.mrf.mxu0
    %v707 = vadd.f32 0.0, %v706
    %v708 = vpop.f32.mrf.mxu0
    %709 = vmatprep.mubr.f32.mxu0 0.0
    %710 = vmatmul.mubr.f32.gmra.mxu0 %v245
    %v711 = vpop.f32.mrf.mxu0
    %v712 = vadd.f32 0.0, %v711
    %v713 = vpop.f32.mrf.mxu0
    %714 = vmatprep.mubr.f32.mxu0 0.0
    %715 = vmatmul.mubr.f32.gmra.mxu0 %v250
    %v716 = vpop.f32.mrf.mxu0
    %v717 = vadd.f32 0.0, %v716
    %v718 = vpop.f32.mrf.mxu0
    %719 = vdwg.mxu0
    %720 = vst [vmem:[#allocation10] sm:$0xff] %v642
    %721 = vst [vmem:[#allocation10 + $0x8] sm:$0xff] %v647
    %722 = vst [vmem:[#allocation10 + $0x10] sm:$0xff] %v652
    %723 = vst [vmem:[#allocation10 + $0x18] sm:$0xff] %v657
    %724 = vst [vmem:[#allocation10 + $0x20] sm:$0xff] %v662
    %725 = vst [vmem:[#allocation10 + $0x28] sm:$0xff] %v667
    %726 = vst [vmem:[#allocation10 + $0x30] sm:$0xff] %v672
    %727 = vst [vmem:[#allocation10 + $0x38] sm:$0xff] %v677
    %728 = vst [vmem:[#allocation10 + $0x40] sm:$0xff] %v682
    %729 = vst [vmem:[#allocation10 + $0x48] sm:$0xff] %v687
    %730 = vst [vmem:[#allocation10 + $0x50] sm:$0xff] %v692
    %731 = vst [vmem:[#allocation10 + $0x58] sm:$0xff] %v697
    %732 = vst [vmem:[#allocation10 + $0x60] sm:$0xff] %v702
    %733 = vst [vmem:[#allocation10 + $0x68] sm:$0xff] %v707
    %734 = vst [vmem:[#allocation10 + $0x70] sm:$0xff] %v712
    %735 = vst [vmem:[#allocation10 + $0x78] sm:$0xff] %v717
    %736 = vmatprep.subr.mxu0 0.0
    %737 = vmatpush1.msra.mxu0 %v411
    %738 = vmatprep.subr.mxu0 0.0
    %739 = vmatpush1.msra.mxu0 %v406
    %740 = vmatprep.subr.mxu0 0.0
    %741 = vmatpush1.msra.mxu0 %v401
    %742 = vmatprep.subr.mxu0 0.0
    %743 = vmatpush1.msra.mxu0 %v396
    %744 = vmatprep.subr.mxu0 0.0
    %745 = vmatpush1.msra.mxu0 %v391
    %746 = vmatprep.subr.mxu0 0.0
    %747 = vmatpush1.msra.mxu0 %v386
    %748 = vmatprep.subr.mxu0 0.0
    %749 = vmatpush1.msra.mxu0 %v381
    %750 = vmatprep.subr.mxu0 0.0
    %751 = vmatpush1.msra.mxu0 %v376
    %752 = vmatprep.subr.mxu0 0.0
    %753 = vmatpush1.msra.mxu0 %v371
    %754 = vmatprep.subr.mxu0 0.0
    %755 = vmatpush1.msra.mxu0 %v366
    %756 = vmatprep.subr.mxu0 0.0
    %757 = vmatpush1.msra.mxu0 %v361
    %758 = vmatprep.subr.mxu0 0.0
    %759 = vmatpush1.msra.mxu0 %v356
    %760 = vmatprep.subr.mxu0 0.0
    %761 = vmatpush1.msra.mxu0 %v351
    %762 = vmatprep.subr.mxu0 0.0
    %763 = vmatpush1.msra.mxu0 %v346
    %764 = vmatprep.subr.mxu0 0.0
    %765 = vmatpush1.msra.mxu0 %v341
    %766 = vmatprep.subr.mxu0 0.0
    %767 = vmatpush1.msra.mxu0 %v336
    %768 = vmatprep.subr.mxu0 0.0
    %769 = vmatpush2.msra.mxu0 0.0
    %770 = vmatprep.subr.mxu0 0.0
    %771 = vmatpush2.msra.mxu0 0.0
    %772 = vmatprep.subr.mxu0 0.0
    %773 = vmatpush2.msra.mxu0 0.0
    %774 = vmatprep.subr.mxu0 0.0
    %775 = vmatpush2.msra.mxu0 0.0
    %776 = vmatprep.subr.mxu0 0.0
    %777 = vmatpush2.msra.mxu0 0.0
    %778 = vmatprep.subr.mxu0 0.0
    %779 = vmatpush2.msra.mxu0 0.0
    %780 = vmatprep.subr.mxu0 0.0
    %781 = vmatpush2.msra.mxu0 0.0
    %782 = vmatprep.subr.mxu0 0.0
    %783 = vmatpush2.msra.mxu0 0.0
    %784 = vmatprep.subr.mxu0 0.0
    %785 = vmatpush2.msra.mxu0 0.0
    %786 = vmatprep.subr.mxu0 0.0
    %787 = vmatpush2.msra.mxu0 0.0
    %788 = vmatprep.subr.mxu0 0.0
    %789 = vmatpush2.msra.mxu0 0.0
    %790 = vmatprep.subr.mxu0 0.0
    %791 = vmatpush2.msra.mxu0 0.0
    %792 = vmatprep.subr.mxu0 0.0
    %793 = vmatpush2.msra.mxu0 0.0
    %794 = vmatprep.subr.mxu0 0.0
    %795 = vmatpush2.msra.mxu0 0.0
    %796 = vmatprep.subr.mxu0 0.0
    %797 = vmatpush2.msra.mxu0 0.0
    %798 = vmatprep.subr.mxu0 0.0
    %799 = vmatpush2.msra.mxu0 0.0
    %800 = vmatprep.mubr.f32.mxu0 0.0
    %801 = vmatmul.mubr.f32.gmra.mxu0 %v642
    %v802 = vpop.f32.mrf.mxu0
    %v803 = vadd.f32 0.0, %v802
    %v804 = vpop.f32.mrf.mxu0
    %805 = vmatprep.mubr.f32.mxu0 0.0
    %806 = vmatmul.mubr.f32.gmra.mxu0 %v647
    %v807 = vpop.f32.mrf.mxu0
    %v808 = vadd.f32 0.0, %v807
    %v809 = vpop.f32.mrf.mxu0
    %810 = vmatprep.mubr.f32.mxu0 0.0
    %811 = vmatmul.mubr.f32.gmra.mxu0 %v652
    %v812 = vpop.f32.mrf.mxu0
    %v813 = vadd.f32 0.0, %v812
    %v814 = vpop.f32.mrf.mxu0
    %815 = vmatprep.mubr.f32.mxu0 0.0
    %816 = vmatmul.mubr.f32.gmra.mxu0 %v657
    %v817 = vpop.f32.mrf.mxu0
    %v818 = vadd.f32 0.0, %v817
    %v819 = vpop.f32.mrf.mxu0
    %820 = vmatprep.mubr.f32.mxu0 0.0
    %821 = vmatmul.mubr.f32.gmra.mxu0 %v662
    %v822 = vpop.f32.mrf.mxu0
    %v823 = vadd.f32 0.0, %v822
    %v824 = vpop.f32.mrf.mxu0
    %825 = vmatprep.mubr.f32.mxu0 0.0
    %826 = vmatmul.mubr.f32.gmra.mxu0 %v667
    %v827 = vpop.f32.mrf.mxu0
    %v828 = vadd.f32 0.0, %v827
    %v829 = vpop.f32.mrf.mxu0
    %830 = vmatprep.mubr.f32.mxu0 0.0
    %831 = vmatmul.mubr.f32.gmra.mxu0 %v672
    %v832 = vpop.f32.mrf.mxu0
    %v833 = vadd.f32 0.0, %v832
    %v834 = vpop.f32.mrf.mxu0
    %835 = vmatprep.mubr.f32.mxu0 0.0
    %836 = vmatmul.mubr.f32.gmra.mxu0 %v677
    %v837 = vpop.f32.mrf.mxu0
    %v838 = vadd.f32 0.0, %v837
    %v839 = vpop.f32.mrf.mxu0
    %840 = vmatprep.mubr.f32.mxu0 0.0
    %841 = vmatmul.mubr.f32.gmra.mxu0 %v682
    %v842 = vpop.f32.mrf.mxu0
    %v843 = vadd.f32 0.0, %v842
    %v844 = vpop.f32.mrf.mxu0
    %845 = vmatprep.mubr.f32.mxu0 0.0
    %846 = vmatmul.mubr.f32.gmra.mxu0 %v687
    %v847 = vpop.f32.mrf.mxu0
    %v848 = vadd.f32 0.0, %v847
    %v849 = vpop.f32.mrf.mxu0
    %850 = vmatprep.mubr.f32.mxu0 0.0
    %851 = vmatmul.mubr.f32.gmra.mxu0 %v692
    %v852 = vpop.f32.mrf.mxu0
    %v853 = vadd.f32 0.0, %v852
    %v854 = vpop.f32.mrf.mxu0
    %855 = vmatprep.mubr.f32.mxu0 0.0
    %856 = vmatmul.mubr.f32.gmra.mxu0 %v697
    %v857 = vpop.f32.mrf.mxu0
    %v858 = vadd.f32 0.0, %v857
    %v859 = vpop.f32.mrf.mxu0
    %860 = vmatprep.mubr.f32.mxu0 0.0
    %861 = vmatmul.mubr.f32.gmra.mxu0 %v702
    %v862 = vpop.f32.mrf.mxu0
    %v863 = vadd.f32 0.0, %v862
    %v864 = vpop.f32.mrf.mxu0
    %865 = vmatprep.mubr.f32.mxu0 0.0
    %866 = vmatmul.mubr.f32.gmra.mxu0 %v707
    %v867 = vpop.f32.mrf.mxu0
    %v868 = vadd.f32 0.0, %v867
    %v869 = vpop.f32.mrf.mxu0
    %870 = vmatprep.mubr.f32.mxu0 0.0
    %871 = vmatmul.mubr.f32.gmra.mxu0 %v712
    %v872 = vpop.f32.mrf.mxu0
    %v873 = vadd.f32 0.0, %v872
    %v874 = vpop.f32.mrf.mxu0
    %875 = vmatprep.mubr.f32.mxu0 0.0
    %876 = vmatmul.mubr.f32.gmra.mxu0 %v717
    %v877 = vpop.f32.mrf.mxu0
    %v878 = vadd.f32 0.0, %v877
    %v879 = vpop.f32.mrf.mxu0
    %880 = vdwg.mxu0
    %881 = vmatprep.subr.mxu0 0.0
    %882 = vmatpush1.msra.mxu0 %v878
    %883 = vmatprep.subr.mxu0 0.0
    %884 = vmatpush1.msra.mxu0 %v873
    %885 = vmatprep.subr.mxu0 0.0
    %886 = vmatpush1.msra.mxu0 %v868
    %887 = vmatprep.subr.mxu0 0.0
    %888 = vmatpush1.msra.mxu0 %v863
    %889 = vmatprep.subr.mxu0 0.0
    %890 = vmatpush1.msra.mxu0 %v858
    %891 = vmatprep.subr.mxu0 0.0
    %892 = vmatpush1.msra.mxu0 %v853
    %893 = vmatprep.subr.mxu0 0.0
    %894 = vmatpush1.msra.mxu0 %v848
    %895 = vmatprep.subr.mxu0 0.0
    %896 = vmatpush1.msra.mxu0 %v843
    %897 = vmatprep.subr.mxu0 0.0
    %898 = vmatpush1.msra.mxu0 %v838
    %899 = vmatprep.subr.mxu0 0.0
    %900 = vmatpush1.msra.mxu0 %v833
    %901 = vmatprep.subr.mxu0 0.0
    %902 = vmatpush1.msra.mxu0 %v828
    %903 = vmatprep.subr.mxu0 0.0
    %904 = vmatpush1.msra.mxu0 %v823
    %905 = vmatprep.subr.mxu0 0.0
    %906 = vmatpush1.msra.mxu0 %v818
    %907 = vmatprep.subr.mxu0 0.0
    %908 = vmatpush1.msra.mxu0 %v813
    %909 = vmatprep.subr.mxu0 0.0
    %910 = vmatpush1.msra.mxu0 %v808
    %911 = vmatprep.subr.mxu0 0.0
    %912 = vmatpush1.msra.mxu0 %v803
    %913 = vmatprep.subr.mxu0 0.0
    %914 = vmatpush2.msra.mxu0 0.0
    %915 = vmatprep.subr.mxu0 0.0
    %916 = vmatpush2.msra.mxu0 0.0
    %917 = vmatprep.subr.mxu0 0.0
    %918 = vmatpush2.msra.mxu0 0.0
    %919 = vmatprep.subr.mxu0 0.0
    %920 = vmatpush2.msra.mxu0 0.0
    %921 = vmatprep.subr.mxu0 0.0
    %922 = vmatpush2.msra.mxu0 0.0
    %923 = vmatprep.subr.mxu0 0.0
    %924 = vmatpush2.msra.mxu0 0.0
    %925 = vmatprep.subr.mxu0 0.0
    %926 = vmatpush2.msra.mxu0 0.0
    %927 = vmatprep.subr.mxu0 0.0
    %928 = vmatpush2.msra.mxu0 0.0
    %929 = vmatprep.subr.mxu0 0.0
    %930 = vmatpush2.msra.mxu0 0.0
    %931 = vmatprep.subr.mxu0 0.0
    %932 = vmatpush2.msra.mxu0 0.0
    %933 = vmatprep.subr.mxu0 0.0
    %934 = vmatpush2.msra.mxu0 0.0
    %935 = vmatprep.subr.mxu0 0.0
    %936 = vmatpush2.msra.mxu0 0.0
    %937 = vmatprep.subr.mxu0 0.0
    %938 = vmatpush2.msra.mxu0 0.0
    %939 = vmatprep.subr.mxu0 0.0
    %940 = vmatpush2.msra.mxu0 0.0
    %941 = vmatprep.subr.mxu0 0.0
    %942 = vmatpush2.msra.mxu0 0.0
    %943 = vmatprep.subr.mxu0 0.0
    %944 = vmatpush2.msra.mxu0 0.0
    %945 = vmatprep.mubr.f32.mxu0 0.0
    %946 = vmatmul.mubr.f32.gmra.mxu0 %v336
    %v947 = vpop.f32.mrf.mxu0
    %v948 = vadd.f32 0.0, %v947
    %v949 = vpop.f32.mrf.mxu0
    %950 = vmatprep.mubr.f32.mxu0 0.0
    %951 = vmatmul.mubr.f32.gmra.mxu0 %v341
    %v952 = vpop.f32.mrf.mxu0
    %v953 = vadd.f32 0.0, %v952
    %v954 = vpop.f32.mrf.mxu0
    %955 = vmatprep.mubr.f32.mxu0 0.0
    %956 = vmatmul.mubr.f32.gmra.mxu0 %v346
    %v957 = vpop.f32.mrf.mxu0
    %v958 = vadd.f32 0.0, %v957
    %v959 = vpop.f32.mrf.mxu0
    %960 = vmatprep.mubr.f32.mxu0 0.0
    %961 = vmatmul.mubr.f32.gmra.mxu0 %v351
    %v962 = vpop.f32.mrf.mxu0
    %v963 = vadd.f32 0.0, %v962
    %v964 = vpop.f32.mrf.mxu0
    %965 = vmatprep.mubr.f32.mxu0 0.0
    %966 = vmatmul.mubr.f32.gmra.mxu0 %v356
    %v967 = vpop.f32.mrf.mxu0
    %v968 = vadd.f32 0.0, %v967
    %v969 = vpop.f32.mrf.mxu0
    %970 = vmatprep.mubr.f32.mxu0 0.0
    %971 = vmatmul.mubr.f32.gmra.mxu0 %v361
    %v972 = vpop.f32.mrf.mxu0
    %v973 = vadd.f32 0.0, %v972
    %v974 = vpop.f32.mrf.mxu0
    %975 = vmatprep.mubr.f32.mxu0 0.0
    %976 = vmatmul.mubr.f32.gmra.mxu0 %v366
    %v977 = vpop.f32.mrf.mxu0
    %v978 = vadd.f32 0.0, %v977
    %v979 = vpop.f32.mrf.mxu0
    %980 = vmatprep.mubr.f32.mxu0 0.0
    %981 = vmatmul.mubr.f32.gmra.mxu0 %v371
    %v982 = vpop.f32.mrf.mxu0
    %v983 = vadd.f32 0.0, %v982
    %v984 = vpop.f32.mrf.mxu0
    %985 = vmatprep.mubr.f32.mxu0 0.0
    %986 = vmatmul.mubr.f32.gmra.mxu0 %v376
    %v987 = vpop.f32.mrf.mxu0
    %v988 = vadd.f32 0.0, %v987
    %v989 = vpop.f32.mrf.mxu0
    %990 = vmatprep.mubr.f32.mxu0 0.0
    %991 = vmatmul.mubr.f32.gmra.mxu0 %v381
    %v992 = vpop.f32.mrf.mxu0
    %v993 = vadd.f32 0.0, %v992
    %v994 = vpop.f32.mrf.mxu0
    %995 = vmatprep.mubr.f32.mxu0 0.0
    %996 = vmatmul.mubr.f32.gmra.mxu0 %v386
    %v997 = vpop.f32.mrf.mxu0
    %v998 = vadd.f32 0.0, %v997
    %v999 = vpop.f32.mrf.mxu0
    %1000 = vmatprep.mubr.f32.mxu0 0.0
    %1001 = vmatmul.mubr.f32.gmra.mxu0 %v391
    %v1002 = vpop.f32.mrf.mxu0
    %v1003 = vadd.f32 0.0, %v1002
    %v1004 = vpop.f32.mrf.mxu0
    %1005 = vmatprep.mubr.f32.mxu0 0.0
    %1006 = vmatmul.mubr.f32.gmra.mxu0 %v396
    %v1007 = vpop.f32.mrf.mxu0
    %v1008 = vadd.f32 0.0, %v1007
    %v1009 = vpop.f32.mrf.mxu0
    %1010 = vmatprep.mubr.f32.mxu0 0.0
    %1011 = vmatmul.mubr.f32.gmra.mxu0 %v401
    %v1012 = vpop.f32.mrf.mxu0
    %v1013 = vadd.f32 0.0, %v1012
    %v1014 = vpop.f32.mrf.mxu0
    %1015 = vmatprep.mubr.f32.mxu0 0.0
    %1016 = vmatmul.mubr.f32.gmra.mxu0 %v406
    %v1017 = vpop.f32.mrf.mxu0
    %v1018 = vadd.f32 0.0, %v1017
    %v1019 = vpop.f32.mrf.mxu0
    %1020 = vmatprep.mubr.f32.mxu0 0.0
    %1021 = vmatmul.mubr.f32.gmra.mxu0 %v411
    %v1022 = vpop.f32.mrf.mxu0
    %v1023 = vadd.f32 0.0, %v1022
    %v1024 = vpop.f32.mrf.mxu0
    %1025 = vdwg.mxu0
    %1026 = vst [vmem:[#allocation11] sm:$0xff] %v948
    %1027 = vst [vmem:[#allocation11 + $0x8] sm:$0xff] %v953
    %1028 = vst [vmem:[#allocation11 + $0x10] sm:$0xff] %v958
    %1029 = vst [vmem:[#allocation11 + $0x18] sm:$0xff] %v963
    %1030 = vst [vmem:[#allocation11 + $0x20] sm:$0xff] %v968
    %1031 = vst [vmem:[#allocation11 + $0x28] sm:$0xff] %v973
    %1032 = vst [vmem:[#allocation11 + $0x30] sm:$0xff] %v978
    %1033 = vst [vmem:[#allocation11 + $0x38] sm:$0xff] %v983
    %1034 = vst [vmem:[#allocation11 + $0x40] sm:$0xff] %v988
    %1035 = vst [vmem:[#allocation11 + $0x48] sm:$0xff] %v993
    %1036 = vst [vmem:[#allocation11 + $0x50] sm:$0xff] %v998
    %1037 = vst [vmem:[#allocation11 + $0x58] sm:$0xff] %v1003
    %1038 = vst [vmem:[#allocation11 + $0x60] sm:$0xff] %v1008
    %1039 = vst [vmem:[#allocation11 + $0x68] sm:$0xff] %v1013
    %1040 = vst [vmem:[#allocation11 + $0x70] sm:$0xff] %v1018
    %1041 = vst [vmem:[#allocation11 + $0x78] sm:$0xff] %v1023
    // Predicated region
    $region34: #{tpu_custom_call.1} parent=1 // pred_check
      _
    $region35: #{tpu_custom_call.1} parent=1 // pred_check_branch
      %1043 = sbr.rel (0) target = $region37
    $region36: #{tpu_custom_call.1} parent=1 // pred_region
      %s1045 = ssub.s32 2048, 2048
      %1046 = vsyncadd [#allocation4], %s1045
      %s1047 = sshll.u32 [#allocation10], 4
      %s1048 = int_to_ptr.vmem [resolvable:$true] %s1047
      %1053 = dma.vmem_to_hbm [thread:$0]  %s1048, 2048, %s4, [#allocation4], 128, 128, 8
    $region37: #{tpu_custom_call.1} parent=1 // pred_fallthru
      _
    // Predicated region
    $region38: #{tpu_custom_call.1} parent=1 // pred_check
      _
    $region39: #{tpu_custom_call.1} parent=1 // pred_check_branch
      %1055 = sbr.rel (0) target = $region41
    $region40: #{tpu_custom_call.1} parent=1 // pred_region
      %s1057 = ssub.s32 2048, 2048
      %1058 = vsyncadd [#allocation12], %s1057
      %s1059 = sshll.u32 [#allocation11], 4
      %s1060 = int_to_ptr.vmem [resolvable:$true] %s1059
      %1065 = dma.vmem_to_hbm [thread:$0]  %s1060, 2048, %s5, [#allocation12], 128, 128, 8
    $region41: #{tpu_custom_call.1} parent=1 // pred_fallthru
      _
    // Predicated region
    $region42: #{tpu_custom_call.1} parent=1 // pred_check
      _
    $region43: #{tpu_custom_call.1} parent=1 // pred_check_branch
      %1067 = sbr.rel (0) target = $region45
    $region44: #{tpu_custom_call.1} parent=1 // pred_region
      %1068 = dma.done [#allocation4], 2048
    $region45: #{tpu_custom_call.1} parent=1 // pred_fallthru
      _
    // Predicated region
    $region46: #{tpu_custom_call.1} parent=1 // pred_check
      _
    $region47: #{tpu_custom_call.1} parent=1 // pred_check_branch
      %1070 = sbr.rel (0) target = $region49
    $region48: #{tpu_custom_call.1} parent=1 // pred_region
      %1071 = dma.done [#allocation12], 2048
    $region49: #{tpu_custom_call.1} parent=1 // pred_fallthru
      _
    %1072 = vsyncpa [#allocation3], 1
    %1073 = vsyncpa [#allocation6], 1
    %1074 = vsyncpa [#allocation9], 1
    %1075 = vsyncpa [#allocation4], 1
    %1076 = vsyncpa [#allocation12], 1

</llo_original>
